<compile_context>
chip_gen: v7x
topology: tpu7x:2x2x1
jax: 0.10.0
libtpu: 0.0.40
codegen_flags: <defaults>
</compile_context>

<pallas_src>
import jax
import jax.numpy as jnp
from jax.experimental import pallas as pl
from jax.experimental.pallas import tpu as pltpu

NUM_CLASSES = 4   # config['model']['classes']
STRIDE = 4        # default stride argument (unused in the loss math itself)
WH_WEIGHT = 0.1
OFF_WEIGHT = 1.0
MAX_TILE = 1024   # lane-tile cap (512-1024 is ~85% of HBM roofline)


def _pick_tile(hw, cap=MAX_TILE):
    """Largest multiple of 128 that divides hw and is <= cap."""
    assert hw % 128 == 0, "H*W must be a multiple of 128 for this tiling"
    best = 128
    t = 128
    while t <= min(cap, hw):
        if hw % t == 0:
            best = t
        t += 128
    return best


def _centernet_loss_kernel(pred_ref, hm_gt_ref, wh_gt_ref, off_gt_ref, mask_ref,
                           stats_ref,
                           acc_focal, acc_npos, acc_wh, acc_off, acc_mask):
    """Hot loop: elementwise focal + masked L1, accumulated per-lane in VMEM.

    Epilogue (last spatial tile of this core's chunk) does the cross-lane
    reductions once and packs the 5 stats into lanes 0..4 of stats_ref:
      0 = focal_sum (pos+neg), 1 = num_pos, 2 = wh_l1, 3 = off_l1, 4 = mask_sum
    """
    j = pl.program_id(1)

    @pl.when(j == 0)
    def _init():
        acc_focal[...] = jnp.zeros_like(acc_focal)
        acc_npos[...] = jnp.zeros_like(acc_npos)
        acc_wh[...] = jnp.zeros_like(acc_wh)
        acc_off[...] = jnp.zeros_like(acc_off)
        acc_mask[...] = jnp.zeros_like(acc_mask)

    # --- penalty-reduced focal loss on the heatmap head: channels [0, C) ---
    logits = pred_ref[:, :NUM_CLASSES, :].astype(jnp.float32)
    gt = hm_gt_ref[...].astype(jnp.float32)

    p = jax.nn.sigmoid(logits)
    eps = 1e-4
    p = jnp.clip(p, eps, 1.0 - eps)

    pos_mask = (gt >= 1.0).astype(jnp.float32)
    neg_mask = 1.0 - pos_mask
    neg_weights = jnp.square(jnp.square(1.0 - gt))            # (1 - gt)^4
    pos_loss = -jnp.log(p) * jnp.square(1.0 - p) * pos_mask
    neg_loss = -jnp.log(1.0 - p) * jnp.square(p) * neg_weights * neg_mask

    acc_focal[...] += pos_loss + neg_loss
    acc_npos[...] += pos_mask

    # --- masked L1 on wh (channels [C, C+2)) and offset ([C+2, C+4)) ---
    m = mask_ref[...].astype(jnp.float32)          # (B, TILE)
    m3 = m[:, None, :]                             # broadcast over 2 reg chans
    wh_p = pred_ref[:, NUM_CLASSES:NUM_CLASSES + 2, :].astype(jnp.float32)
    off_p = pred_ref[:, NUM_CLASSES + 2:NUM_CLASSES + 4, :].astype(jnp.float32)
    acc_wh[...] += jnp.abs(wh_p - wh_gt_ref[...].astype(jnp.float32)) * m3
    acc_off[...] += jnp.abs(off_p - off_gt_ref[...].astype(jnp.float32)) * m3
    acc_mask[...] += m

    @pl.when(j == pl.num_programs(1) - 1)
    def _finalize():
        focal_sum = jnp.sum(acc_focal[...])
        num_pos = jnp.sum(acc_npos[...])
        wh_l1 = jnp.sum(acc_wh[...])
        off_l1 = jnp.sum(acc_off[...])
        # denominator convention: mask expanded over the 2 regression channels
        mask_sum = 2.0 * jnp.sum(acc_mask[...])

        lane = jax.lax.broadcasted_iota(jnp.int32, stats_ref.shape, 2)
        vec = ((lane == 0).astype(jnp.float32) * focal_sum
               + (lane == 1).astype(jnp.float32) * num_pos
               + (lane == 2).astype(jnp.float32) * wh_l1
               + (lane == 3).astype(jnp.float32) * off_l1
               + (lane == 4).astype(jnp.float32) * mask_sum)
        stats_ref[...] = vec


@jax.jit
def centernet_loss_forward(pred, hm_gt, wh_gt, off_gt, center_mask):
    """Equivalent of centernet_loss_module.forward(input, target)[0].

    pred:        (B, NUM_CLASSES + 4, H, W)  -- NCHW raw head output (f32/bf16)
    hm_gt:       (B, NUM_CLASSES, H, W)      -- gaussian heatmap target
    wh_gt:       (B, 2, H, W)
    off_gt:      (B, 2, H, W)
    center_mask: (B, H, W)                   -- 1.0 at object centers
    """
    B, Ctot, H, W = pred.shape
    assert Ctot == NUM_CLASSES + 4
    HW = H * W
    TILE = _pick_tile(HW)
    num_tiles = HW // TILE
    # Leading "parallel" axis splits spatial tiles across TensorCores (v7x).
    ncores = 2 if (num_tiles % 2 == 0 and num_tiles >= 2) else 1
    tiles_per_core = num_tiles // ncores

    # Contiguous reshapes only -- no head slicing / mask broadcast in HBM.
    pred3 = pred.reshape(B, Ctot, HW)
    hm3 = hm_gt.reshape(B, NUM_CLASSES, HW)
    wh3 = wh_gt.reshape(B, 2, HW)
    off3 = off_gt.reshape(B, 2, HW)
    mask2 = center_mask.reshape(B, HW)

    def spec3(chans):
        return pl.BlockSpec((B, chans, TILE),
                            lambda c, j: (0, 0, c * tiles_per_core + j))

    mask_spec = pl.BlockSpec((B, TILE),
                             lambda c, j: (0, c * tiles_per_core + j))

    stats = pl.pallas_call(
        _centernet_loss_kernel,
        out_shape=jax.ShapeDtypeStruct((ncores, 8, 128), jnp.float32),
        grid_spec=pltpu.PrefetchScalarGridSpec(
            num_scalar_prefetch=0,
            grid=(ncores, tiles_per_core),
            in_specs=[
                spec3(Ctot),          # pred: all heads, single DMA per step
                spec3(NUM_CLASSES),   # heatmap target
                spec3(2),             # wh target
                spec3(2),             # offset target
                mask_spec,            # center mask (channel-broadcast in-kernel)
            ],
            out_specs=pl.BlockSpec((1, 8, 128), lambda c, j: (c, 0, 0)),
            scratch_shapes=[
                pltpu.VMEM((B, NUM_CLASSES, TILE), jnp.float32),  # focal
                pltpu.VMEM((B, NUM_CLASSES, TILE), jnp.float32),  # num_pos
                pltpu.VMEM((B, 2, TILE), jnp.float32),            # wh |d|*m
                pltpu.VMEM((B, 2, TILE), jnp.float32),            # off |d|*m
                pltpu.VMEM((B, TILE), jnp.float32),               # mask
            ]),
        compiler_params=pltpu.CompilerParams(
            dimension_semantics=("parallel", "arbitrary")),
    )(pred3, hm3, wh3, off3, mask2)

    row = jnp.sum(stats[:, 0, :], axis=0)   # combine per-core partials
    focal_sum = row[0]
    num_pos = row[1]
    wh_l1 = row[2]
    off_l1 = row[3]
    mask_sum = row[4]

    # pos_loss is exactly 0 when num_pos == 0, so this matches the usual
    # where(num_pos > 0, (pos+neg)/num_pos, neg) formulation.
    hm_loss = focal_sum / jnp.maximum(num_pos, 1.0)
    wh_loss = wh_l1 / (mask_sum + 1e-4)
    off_loss = off_l1 / (mask_sum + 1e-4)
    total = hm_loss + WH_WEIGHT * wh_loss + OFF_WEIGHT * off_loss
    return total, hm_loss, wh_loss, off_loss


class CenternetLossModule:
    """Mirrors `centernet_loss_module.forward`: returns a list with one result."""

    def __init__(self, config, stride=4):
        self.num_classes = config['model']['classes']
        self.stride = stride

    def __call__(self, inputs, target=None):
        hm_gt, wh_gt, off_gt, center_mask = target
        result = []
        result.append(centernet_loss_forward(inputs, hm_gt, wh_gt, off_gt,
                                              center_mask))
        return result


def _make_targets(key, B, C, H, W):
    """Deterministic synthetic CenterNet targets with a few exact peaks."""
    hm = jnp.zeros((B, C, H, W), jnp.float32)
    mask = jnp.zeros((B, H, W), jnp.float32)
    centers = [(4, 5, 1), (10, 12, 2), (7, 3, 0)]
    ys = jnp.arange(H)[:, None].astype(jnp.float32)
    xs = jnp.arange(W)[None, :].astype(jnp.float32)
    for b in range(B):
        for (cy, cx, cls) in centers:
            g = jnp.exp(-((ys - cy) ** 2 + (xs - cx) ** 2) / (2.0 * 1.5 ** 2))
            hm = hm.at[b, cls].set(jnp.maximum(hm[b, cls], g))
            hm = hm.at[b, cls, cy, cx].set(1.0)
            mask = mask.at[b, cy, cx].set(1.0)
    k1, k2 = jax.random.split(key)
    wh_gt = jax.random.uniform(k1, (B, 2, H, W), jnp.float32, 1.0, 8.0)
    off_gt = jax.random.uniform(k2, (B, 2, H, W), jnp.float32, 0.0, 1.0)
    return hm, wh_gt, off_gt, mask


if __name__ == "__main__":
    config = {"model": {"classes": NUM_CLASSES}, "device_id": 0}
    module = CenternetLossModule(config, stride=STRIDE)

    B, H, W = 2, 16, 16
    key = jax.random.PRNGKey(0)
    k_pred, k_tgt = jax.random.split(key)
    pred = jax.random.normal(k_pred, (B, NUM_CLASSES + 4, H, W), jnp.float32)
    target = _make_targets(k_tgt, B, NUM_CLASSES, H, W)

    result = module(pred, target)
    total, hm_loss, wh_loss, off_loss = result[0]
    jax.block_until_ready(total)

    # pure-JAX reference of the same math
    def ref_loss(pred, hm_gt, wh_gt, off_gt, mask):
        hm_logit = pred[:, :NUM_CLASSES]
        wh_p = pred[:, NUM_CLASSES:NUM_CLASSES + 2]
        off_p = pred[:, NUM_CLASSES + 2:]
        p = jnp.clip(jax.nn.sigmoid(hm_logit), 1e-4, 1 - 1e-4)
        pos = (hm_gt >= 1.0).astype(jnp.float32)
        neg = 1.0 - pos
        pos_l = jnp.sum(-jnp.log(p) * (1 - p) ** 2 * pos)
        neg_l = jnp.sum(-jnp.log(1 - p) * p ** 2 * (1 - hm_gt) ** 4 * neg)
        npos = jnp.sum(pos)
        hm_l = jnp.where(npos > 0, (pos_l + neg_l) / jnp.maximum(npos, 1.0), neg_l)
        m2 = jnp.broadcast_to(mask[:, None], wh_p.shape)
        wh_l = jnp.sum(jnp.abs(wh_p - wh_gt) * m2) / (jnp.sum(m2) + 1e-4)
        off_l = jnp.sum(jnp.abs(off_p - off_gt) * m2) / (jnp.sum(m2) + 1e-4)
        return hm_l + WH_WEIGHT * wh_l + OFF_WEIGHT * off_l

    ref = ref_loss(pred, *target)
    assert jnp.allclose(total, ref, rtol=1e-4, atol=1e-4), (total, ref)
    print("KERNEL_OK")
</pallas_src>

<mosaic_0001>
module attributes {stable_mosaic.version = 11 : i64} {
  func.func @_centernet_loss_kernel(%arg0: i32, %arg1: i32, %arg2: memref<2x8x256xf32, #tpu.memory_space<vmem>>, %arg3: memref<2x4x256xf32, #tpu.memory_space<vmem>>, %arg4: memref<2x2x256xf32, #tpu.memory_space<vmem>>, %arg5: memref<2x2x256xf32, #tpu.memory_space<vmem>>, %arg6: memref<2x256xf32, #tpu.memory_space<vmem>>, %arg7: memref<1x8x128xf32, #tpu.memory_space<vmem>>, %arg8: memref<2x4x256xf32, #tpu.memory_space<vmem>>, %arg9: memref<2x4x256xf32, #tpu.memory_space<vmem>>, %arg10: memref<2x2x256xf32, #tpu.memory_space<vmem>>, %arg11: memref<2x2x256xf32, #tpu.memory_space<vmem>>, %arg12: memref<2x256xf32, #tpu.memory_space<vmem>>) attributes {dimension_semantics = [#tpu.dimension_semantics<parallel>, #tpu.dimension_semantics<arbitrary>], iteration_bounds = array<i64: 1, 1>, scalar_prefetch = 0 : i64, scratch_operands = 5 : i64, tpu.core_type = #tpu.core_type<tc>, window_params = [{transform_indices = @transform_0, window_bounds = array<i64: 2, 8, 256>}, {transform_indices = @transform_1, window_bounds = array<i64: 2, 4, 256>}, {transform_indices = @transform_2, window_bounds = array<i64: 2, 2, 256>}, {transform_indices = @transform_3, window_bounds = array<i64: 2, 2, 256>}, {transform_indices = @transform_4, window_bounds = array<i64: 2, 256>}, {transform_indices = @transform_5, window_bounds = array<i64: 1, 8, 128>}]} {
    %c0_i32 = arith.constant 0 : i32
    %0 = arith.cmpi eq, %arg1, %c0_i32 : i32
    %1 = arith.extui %0 : i1 to i32
    %c0_i32_0 = arith.constant 0 : i32
    %2 = arith.cmpi ne, %1, %c0_i32_0 : i32
    scf.if %2 {
      %cst_57 = arith.constant 0.000000e+00 : f32
      %74 = vector.broadcast %cst_57 : f32 to vector<2x4x256xf32>
      %c0_58 = arith.constant 0 : index
      %c0_59 = arith.constant 0 : index
      %c0_60 = arith.constant 0 : index
      %75 = vector.load %arg8[%c0_58, %c0_59, %c0_60] : memref<2x4x256xf32, #tpu.memory_space<vmem>>, vector<2x4x256xf32>
      tpu.vector_store %arg8[%c0_58, %c0_59, %c0_60], %74 {strides = array<i32>} : memref<2x4x256xf32, #tpu.memory_space<vmem>>, vector<2x4x256xf32>,
      %cst_61 = arith.constant 0.000000e+00 : f32
      %76 = vector.broadcast %cst_61 : f32 to vector<2x4x256xf32>
      %c0_62 = arith.constant 0 : index
      %c0_63 = arith.constant 0 : index
      %c0_64 = arith.constant 0 : index
      %77 = vector.load %arg9[%c0_62, %c0_63, %c0_64] : memref<2x4x256xf32, #tpu.memory_space<vmem>>, vector<2x4x256xf32>
      tpu.vector_store %arg9[%c0_62, %c0_63, %c0_64], %76 {strides = array<i32>} : memref<2x4x256xf32, #tpu.memory_space<vmem>>, vector<2x4x256xf32>,
      %cst_65 = arith.constant 0.000000e+00 : f32
      %78 = vector.broadcast %cst_65 : f32 to vector<2x2x256xf32>
      %c0_66 = arith.constant 0 : index
      %c0_67 = arith.constant 0 : index
      %c0_68 = arith.constant 0 : index
      %79 = vector.load %arg10[%c0_66, %c0_67, %c0_68] : memref<2x2x256xf32, #tpu.memory_space<vmem>>, vector<2x2x256xf32>
      tpu.vector_store %arg10[%c0_66, %c0_67, %c0_68], %78 {strides = array<i32>} : memref<2x2x256xf32, #tpu.memory_space<vmem>>, vector<2x2x256xf32>,
      %cst_69 = arith.constant 0.000000e+00 : f32
      %80 = vector.broadcast %cst_69 : f32 to vector<2x2x256xf32>
      %c0_70 = arith.constant 0 : index
      %c0_71 = arith.constant 0 : index
      %c0_72 = arith.constant 0 : index
      %81 = vector.load %arg11[%c0_70, %c0_71, %c0_72] : memref<2x2x256xf32, #tpu.memory_space<vmem>>, vector<2x2x256xf32>
      tpu.vector_store %arg11[%c0_70, %c0_71, %c0_72], %80 {strides = array<i32>} : memref<2x2x256xf32, #tpu.memory_space<vmem>>, vector<2x2x256xf32>,
      %cst_73 = arith.constant 0.000000e+00 : f32
      %82 = vector.broadcast %cst_73 : f32 to vector<2x256xf32>
      %c0_74 = arith.constant 0 : index
      %c0_75 = arith.constant 0 : index
      %83 = vector.load %arg12[%c0_74, %c0_75] : memref<2x256xf32, #tpu.memory_space<vmem>>, vector<2x256xf32>
      tpu.vector_store %arg12[%c0_74, %c0_75], %82 {strides = array<i32>} : memref<2x256xf32, #tpu.memory_space<vmem>>, vector<2x256xf32>,
    } else {
    }
    %c0 = arith.constant 0 : index
    %c0_1 = arith.constant 0 : index
    %c0_2 = arith.constant 0 : index
    %3 = vector.load %arg2[%c0, %c0_1, %c0_2] : memref<2x8x256xf32, #tpu.memory_space<vmem>>, vector<2x4x256xf32>
    %c0_3 = arith.constant 0 : index
    %c0_4 = arith.constant 0 : index
    %c0_5 = arith.constant 0 : index
    %4 = vector.load %arg3[%c0_3, %c0_4, %c0_5] : memref<2x4x256xf32, #tpu.memory_space<vmem>>, vector<2x4x256xf32>
    %5 = arith.negf %3 : vector<2x4x256xf32>
    %6 = math.exp %5 : vector<2x4x256xf32>
    %cst = arith.constant 1.000000e+00 : f32
    %7 = vector.broadcast %cst : f32 to vector<2x4x256xf32>
    %8 = arith.addf %7, %6 : vector<2x4x256xf32>
    %9 = arith.divf %7, %8 : vector<2x4x256xf32>
    %cst_6 = arith.constant 9.99999974E-5 : f32
    %cst_7 = arith.constant 0.999899983 : f32
    %10 = vector.broadcast %cst_6 : f32 to vector<2x4x256xf32>
    %11 = arith.maximumf %10, %9 : vector<2x4x256xf32>
    %12 = vector.broadcast %cst_7 : f32 to vector<2x4x256xf32>
    %13 = arith.minimumf %12, %11 : vector<2x4x256xf32>
    %cst_8 = arith.constant 1.000000e+00 : f32
    %14 = vector.broadcast %cst_8 : f32 to vector<2x4x256xf32>
    %15 = arith.cmpf oge, %4, %14 : vector<2x4x256xf32>
    %16 = arith.extui %15 : vector<2x4x256xi1> to vector<2x4x256xi32>
    %17 = arith.sitofp %16 : vector<2x4x256xi32> to vector<2x4x256xf32>
    %cst_9 = arith.constant 1.000000e+00 : f32
    %18 = vector.broadcast %cst_9 : f32 to vector<2x4x256xf32>
    %19 = arith.subf %18, %17 : vector<2x4x256xf32>
    %cst_10 = arith.constant 1.000000e+00 : f32
    %20 = vector.broadcast %cst_10 : f32 to vector<2x4x256xf32>
    %21 = arith.subf %20, %4 : vector<2x4x256xf32>
    %22 = arith.mulf %21, %21 : vector<2x4x256xf32>
    %23 = arith.mulf %22, %22 : vector<2x4x256xf32>
    %24 = math.log %13 : vector<2x4x256xf32>
    %cst_11 = arith.constant 0.000000e+00 : f32
    %25 = vector.broadcast %cst_11 : f32 to vector<2x4x256xf32>
    %26 = arith.subf %25, %24 : vector<2x4x256xf32>
    %cst_12 = arith.constant 1.000000e+00 : f32
    %27 = vector.broadcast %cst_12 : f32 to vector<2x4x256xf32>
    %28 = arith.subf %27, %13 : vector<2x4x256xf32>
    %29 = arith.mulf %28, %28 : vector<2x4x256xf32>
    %30 = arith.mulf %26, %29 : vector<2x4x256xf32>
    %31 = arith.mulf %30, %17 : vector<2x4x256xf32>
    %cst_13 = arith.constant 1.000000e+00 : f32
    %32 = vector.broadcast %cst_13 : f32 to vector<2x4x256xf32>
    %33 = arith.subf %32, %13 : vector<2x4x256xf32>
    %34 = math.log %33 : vector<2x4x256xf32>
    %cst_14 = arith.constant 0.000000e+00 : f32
    %35 = vector.broadcast %cst_14 : f32 to vector<2x4x256xf32>
    %36 = arith.subf %35, %34 : vector<2x4x256xf32>
    %37 = arith.mulf %13, %13 : vector<2x4x256xf32>
    %38 = arith.mulf %36, %37 : vector<2x4x256xf32>
    %39 = arith.mulf %38, %23 : vector<2x4x256xf32>
    %40 = arith.mulf %39, %19 : vector<2x4x256xf32>
    %c0_15 = arith.constant 0 : index
    %c0_16 = arith.constant 0 : index
    %c0_17 = arith.constant 0 : index
    %41 = vector.load %arg8[%c0_15, %c0_16, %c0_17] : memref<2x4x256xf32, #tpu.memory_space<vmem>>, vector<2x4x256xf32>
    %42 = arith.addf %31, %40 : vector<2x4x256xf32>
    %43 = arith.addf %41, %42 : vector<2x4x256xf32>
    %c0_18 = arith.constant 0 : index
    %c0_19 = arith.constant 0 : index
    %c0_20 = arith.constant 0 : index
    %44 = vector.load %arg8[%c0_18, %c0_19, %c0_20] : memref<2x4x256xf32, #tpu.memory_space<vmem>>, vector<2x4x256xf32>
    tpu.vector_store %arg8[%c0_18, %c0_19, %c0_20], %43 {strides = array<i32>} : memref<2x4x256xf32, #tpu.memory_space<vmem>>, vector<2x4x256xf32>,
    %c0_21 = arith.constant 0 : index
    %c0_22 = arith.constant 0 : index
    %c0_23 = arith.constant 0 : index
    %45 = vector.load %arg9[%c0_21, %c0_22, %c0_23] : memref<2x4x256xf32, #tpu.memory_space<vmem>>, vector<2x4x256xf32>
    %46 = arith.addf %45, %17 : vector<2x4x256xf32>
    %c0_24 = arith.constant 0 : index
    %c0_25 = arith.constant 0 : index
    %c0_26 = arith.constant 0 : index
    %47 = vector.load %arg9[%c0_24, %c0_25, %c0_26] : memref<2x4x256xf32, #tpu.memory_space<vmem>>, vector<2x4x256xf32>
    tpu.vector_store %arg9[%c0_24, %c0_25, %c0_26], %46 {strides = array<i32>} : memref<2x4x256xf32, #tpu.memory_space<vmem>>, vector<2x4x256xf32>,
    %c0_27 = arith.constant 0 : index
    %c0_28 = arith.constant 0 : index
    %48 = vector.load %arg6[%c0_27, %c0_28] : memref<2x256xf32, #tpu.memory_space<vmem>>, vector<2x256xf32>
    %49 = vector.shape_cast %48 : vector<2x256xf32> to vector<2x1x256xf32>
    %c0_29 = arith.constant 0 : index
    %c4 = arith.constant 4 : index
    %c0_30 = arith.constant 0 : index
    %50 = vector.load %arg2[%c0_29, %c4, %c0_30] : memref<2x8x256xf32, #tpu.memory_space<vmem>>, vector<2x2x256xf32>
    %c0_31 = arith.constant 0 : index
    %c6 = arith.constant 6 : index
    %c0_32 = arith.constant 0 : index
    %51 = vector.load %arg2[%c0_31, %c6, %c0_32] : memref<2x8x256xf32, #tpu.memory_space<vmem>>, vector<2x2x256xf32>
    %c0_33 = arith.constant 0 : index
    %c0_34 = arith.constant 0 : index
    %c0_35 = arith.constant 0 : index
    %52 = vector.load %arg10[%c0_33, %c0_34, %c0_35] : memref<2x2x256xf32, #tpu.memory_space<vmem>>, vector<2x2x256xf32>
    %c0_36 = arith.constant 0 : index
    %c0_37 = arith.constant 0 : index
    %c0_38 = arith.constant 0 : index
    %53 = vector.load %arg4[%c0_36, %c0_37, %c0_38] : memref<2x2x256xf32, #tpu.memory_space<vmem>>, vector<2x2x256xf32>
    %54 = arith.subf %50, %53 : vector<2x2x256xf32>
    %55 = math.absf %54 : vector<2x2x256xf32>
    %56 = vector.broadcast %49 : vector<2x1x256xf32> to vector<2x2x256xf32>
    %57 = arith.mulf %55, %56 : vector<2x2x256xf32>
    %58 = arith.addf %52, %57 : vector<2x2x256xf32>
    %c0_39 = arith.constant 0 : index
    %c0_40 = arith.constant 0 : index
    %c0_41 = arith.constant 0 : index
    %59 = vector.load %arg10[%c0_39, %c0_40, %c0_41] : memref<2x2x256xf32, #tpu.memory_space<vmem>>, vector<2x2x256xf32>
    tpu.vector_store %arg10[%c0_39, %c0_40, %c0_41], %58 {strides = array<i32>} : memref<2x2x256xf32, #tpu.memory_space<vmem>>, vector<2x2x256xf32>,
    %c0_42 = arith.constant 0 : index
    %c0_43 = arith.constant 0 : index
    %c0_44 = arith.constant 0 : index
    %60 = vector.load %arg11[%c0_42, %c0_43, %c0_44] : memref<2x2x256xf32, #tpu.memory_space<vmem>>, vector<2x2x256xf32>
    %c0_45 = arith.constant 0 : index
    %c0_46 = arith.constant 0 : index
    %c0_47 = arith.constant 0 : index
    %61 = vector.load %arg5[%c0_45, %c0_46, %c0_47] : memref<2x2x256xf32, #tpu.memory_space<vmem>>, vector<2x2x256xf32>
    %62 = arith.subf %51, %61 : vector<2x2x256xf32>
    %63 = math.absf %62 : vector<2x2x256xf32>
    %64 = vector.broadcast %49 : vector<2x1x256xf32> to vector<2x2x256xf32>
    %65 = arith.mulf %63, %64 : vector<2x2x256xf32>
    %66 = arith.addf %60, %65 : vector<2x2x256xf32>
    %c0_48 = arith.constant 0 : index
    %c0_49 = arith.constant 0 : index
    %c0_50 = arith.constant 0 : index
    %67 = vector.load %arg11[%c0_48, %c0_49, %c0_50] : memref<2x2x256xf32, #tpu.memory_space<vmem>>, vector<2x2x256xf32>
    tpu.vector_store %arg11[%c0_48, %c0_49, %c0_50], %66 {strides = array<i32>} : memref<2x2x256xf32, #tpu.memory_space<vmem>>, vector<2x2x256xf32>,
    %c0_51 = arith.constant 0 : index
    %c0_52 = arith.constant 0 : index
    %68 = vector.load %arg12[%c0_51, %c0_52] : memref<2x256xf32, #tpu.memory_space<vmem>>, vector<2x256xf32>
    %69 = arith.addf %68, %48 : vector<2x256xf32>
    %c0_53 = arith.constant 0 : index
    %c0_54 = arith.constant 0 : index
    %70 = vector.load %arg12[%c0_53, %c0_54] : memref<2x256xf32, #tpu.memory_space<vmem>>, vector<2x256xf32>
    tpu.vector_store %arg12[%c0_53, %c0_54], %69 {strides = array<i32>} : memref<2x256xf32, #tpu.memory_space<vmem>>, vector<2x256xf32>,
    %c0_i32_55 = arith.constant 0 : i32
    %71 = arith.cmpi eq, %arg1, %c0_i32_55 : i32
    %72 = arith.extui %71 : i1 to i32
    %c0_i32_56 = arith.constant 0 : i32
    %73 = arith.cmpi ne, %72, %c0_i32_56 : i32
    scf.if %73 {
      %c0_57 = arith.constant 0 : index
      %c0_58 = arith.constant 0 : index
      %c0_59 = arith.constant 0 : index
      %74 = vector.load %arg8[%c0_57, %c0_58, %c0_59] : memref<2x4x256xf32, #tpu.memory_space<vmem>>, vector<2x4x256xf32>
      %75 = vector.shape_cast %74 : vector<2x4x256xf32> to vector<1x2x4x256xf32>
      %cst_60 = arith.constant dense<0.000000e+00> : vector<1xf32>
      %76 = vector.multi_reduction <add>, %75, %cst_60 [1, 2, 3] : vector<1x2x4x256xf32> to vector<1xf32>
      %77 = vector.shape_cast %76 : vector<1xf32> to vector<1x1x1x1xf32>
      %78 = vector.extract %77[0, 0, 0, 0] : f32 from vector<1x1x1x1xf32>
      %c0_61 = arith.constant 0 : index
      %c0_62 = arith.constant 0 : index
      %c0_63 = arith.constant 0 : index
      %79 = vector.load %arg9[%c0_61, %c0_62, %c0_63] : memref<2x4x256xf32, #tpu.memory_space<vmem>>, vector<2x4x256xf32>
      %80 = vector.shape_cast %79 : vector<2x4x256xf32> to vector<1x2x4x256xf32>
      %cst_64 = arith.constant dense<0.000000e+00> : vector<1xf32>
      %81 = vector.multi_reduction <add>, %80, %cst_64 [1, 2, 3] : vector<1x2x4x256xf32> to vector<1xf32>
      %82 = vector.shape_cast %81 : vector<1xf32> to vector<1x1x1x1xf32>
      %83 = vector.extract %82[0, 0, 0, 0] : f32 from vector<1x1x1x1xf32>
      %c0_65 = arith.constant 0 : index
      %c0_66 = arith.constant 0 : index
      %c0_67 = arith.constant 0 : index
      %84 = vector.load %arg10[%c0_65, %c0_66, %c0_67] : memref<2x2x256xf32, #tpu.memory_space<vmem>>, vector<2x2x256xf32>
      %85 = vector.shape_cast %84 : vector<2x2x256xf32> to vector<1x2x2x256xf32>
      %cst_68 = arith.constant dense<0.000000e+00> : vector<1xf32>
      %86 = vector.multi_reduction <add>, %85, %cst_68 [1, 2, 3] : vector<1x2x2x256xf32> to vector<1xf32>
      %87 = vector.shape_cast %86 : vector<1xf32> to vector<1x1x1x1xf32>
      %88 = vector.extract %87[0, 0, 0, 0] : f32 from vector<1x1x1x1xf32>
      %c0_69 = arith.constant 0 : index
      %c0_70 = arith.constant 0 : index
      %c0_71 = arith.constant 0 : index
      %89 = vector.load %arg11[%c0_69, %c0_70, %c0_71] : memref<2x2x256xf32, #tpu.memory_space<vmem>>, vector<2x2x256xf32>
      %90 = vector.shape_cast %89 : vector<2x2x256xf32> to vector<1x2x2x256xf32>
      %cst_72 = arith.constant dense<0.000000e+00> : vector<1xf32>
      %91 = vector.multi_reduction <add>, %90, %cst_72 [1, 2, 3] : vector<1x2x2x256xf32> to vector<1xf32>
      %92 = vector.shape_cast %91 : vector<1xf32> to vector<1x1x1x1xf32>
      %93 = vector.extract %92[0, 0, 0, 0] : f32 from vector<1x1x1x1xf32>
      %c0_73 = arith.constant 0 : index
      %c0_74 = arith.constant 0 : index
      %94 = vector.load %arg12[%c0_73, %c0_74] : memref<2x256xf32, #tpu.memory_space<vmem>>, vector<2x256xf32>
      %95 = vector.shape_cast %94 : vector<2x256xf32> to vector<1x2x256xf32>
      %cst_75 = arith.constant dense<0.000000e+00> : vector<1xf32>
      %96 = vector.multi_reduction <add>, %95, %cst_75 [1, 2] : vector<1x2x256xf32> to vector<1xf32>
      %97 = vector.shape_cast %96 : vector<1xf32> to vector<1x1x1xf32>
      %98 = vector.extract %97[0, 0, 0] : f32 from vector<1x1x1xf32>
      %cst_76 = arith.constant 2.000000e+00 : f32
      %99 = arith.mulf %cst_76, %98 : f32
      %100 = tpu.iota {dimensions = array<i32: 2>} : vector<1x8x128xi32>
      %c0_i32_77 = arith.constant 0 : i32
      %101 = vector.broadcast %c0_i32_77 : i32 to vector<1x8x128xi32>
      %102 = arith.cmpi eq, %100, %101 : vector<1x8x128xi32>
      %103 = arith.extui %102 : vector<1x8x128xi1> to vector<1x8x128xi32>
      %104 = arith.sitofp %103 : vector<1x8x128xi32> to vector<1x8x128xf32>
      %105 = vector.broadcast %78 : f32 to vector<1x8x128xf32>
      %106 = arith.mulf %104, %105 : vector<1x8x128xf32>
      %c1_i32 = arith.constant 1 : i32
      %107 = vector.broadcast %c1_i32 : i32 to vector<1x8x128xi32>
      %108 = arith.cmpi eq, %100, %107 : vector<1x8x128xi32>
      %109 = arith.extui %108 : vector<1x8x128xi1> to vector<1x8x128xi32>
      %110 = arith.sitofp %109 : vector<1x8x128xi32> to vector<1x8x128xf32>
      %111 = vector.broadcast %83 : f32 to vector<1x8x128xf32>
      %112 = arith.mulf %110, %111 : vector<1x8x128xf32>
      %113 = arith.addf %106, %112 : vector<1x8x128xf32>
      %c2_i32 = arith.constant 2 : i32
      %114 = vector.broadcast %c2_i32 : i32 to vector<1x8x128xi32>
      %115 = arith.cmpi eq, %100, %114 : vector<1x8x128xi32>
      %116 = arith.extui %115 : vector<1x8x128xi1> to vector<1x8x128xi32>
      %117 = arith.sitofp %116 : vector<1x8x128xi32> to vector<1x8x128xf32>
      %118 = vector.broadcast %88 : f32 to vector<1x8x128xf32>
      %119 = arith.mulf %117, %118 : vector<1x8x128xf32>
      %120 = arith.addf %113, %119 : vector<1x8x128xf32>
      %c3_i32 = arith.constant 3 : i32
      %121 = vector.broadcast %c3_i32 : i32 to vector<1x8x128xi32>
      %122 = arith.cmpi eq, %100, %121 : vector<1x8x128xi32>
      %123 = arith.extui %122 : vector<1x8x128xi1> to vector<1x8x128xi32>
      %124 = arith.sitofp %123 : vector<1x8x128xi32> to vector<1x8x128xf32>
      %125 = vector.broadcast %93 : f32 to vector<1x8x128xf32>
      %126 = arith.mulf %124, %125 : vector<1x8x128xf32>
      %127 = arith.addf %120, %126 : vector<1x8x128xf32>
      %c4_i32 = arith.constant 4 : i32
      %128 = vector.broadcast %c4_i32 : i32 to vector<1x8x128xi32>
      %129 = arith.cmpi eq, %100, %128 : vector<1x8x128xi32>
      %130 = arith.extui %129 : vector<1x8x128xi1> to vector<1x8x128xi32>
      %131 = arith.sitofp %130 : vector<1x8x128xi32> to vector<1x8x128xf32>
      %132 = vector.broadcast %99 : f32 to vector<1x8x128xf32>
      %133 = arith.mulf %131, %132 : vector<1x8x128xf32>
      %134 = arith.addf %127, %133 : vector<1x8x128xf32>
      %c0_78 = arith.constant 0 : index
      %c0_79 = arith.constant 0 : index
      %c0_80 = arith.constant 0 : index
      %135 = vector.load %arg7[%c0_78, %c0_79, %c0_80] : memref<1x8x128xf32, #tpu.memory_space<vmem>>, vector<1x8x128xf32>
      tpu.vector_store %arg7[%c0_78, %c0_79, %c0_80], %134 {strides = array<i32>} : memref<1x8x128xf32, #tpu.memory_space<vmem>>, vector<1x8x128xf32>,
    } else {
    }
    return
  }
  func.func @transform_0(%arg0: i32, %arg1: i32) -> (i32, i32, i32) {
    %c1_i32 = arith.constant 1 : i32
    %0 = arith.muli %arg0, %c1_i32 : i32
    %1 = arith.addi %0, %arg1 : i32
    %c0_i32 = arith.constant 0 : i32
    %c0_i32_0 = arith.constant 0 : i32
    %c0_i32_1 = arith.constant 0 : i32
    return %c0_i32, %c0_i32_0, %1 : i32, i32, i32
  }
  func.func @transform_1(%arg0: i32, %arg1: i32) -> (i32, i32, i32) {
    %c1_i32 = arith.constant 1 : i32
    %0 = arith.muli %arg0, %c1_i32 : i32
    %1 = arith.addi %0, %arg1 : i32
    %c0_i32 = arith.constant 0 : i32
    %c0_i32_0 = arith.constant 0 : i32
    %c0_i32_1 = arith.constant 0 : i32
    return %c0_i32, %c0_i32_0, %1 : i32, i32, i32
  }
  func.func @transform_2(%arg0: i32, %arg1: i32) -> (i32, i32, i32) {
    %c1_i32 = arith.constant 1 : i32
    %0 = arith.muli %arg0, %c1_i32 : i32
    %1 = arith.addi %0, %arg1 : i32
    %c0_i32 = arith.constant 0 : i32
    %c0_i32_0 = arith.constant 0 : i32
    %c0_i32_1 = arith.constant 0 : i32
    return %c0_i32, %c0_i32_0, %1 : i32, i32, i32
  }
  func.func @transform_3(%arg0: i32, %arg1: i32) -> (i32, i32, i32) {
    %c1_i32 = arith.constant 1 : i32
    %0 = arith.muli %arg0, %c1_i32 : i32
    %1 = arith.addi %0, %arg1 : i32
    %c0_i32 = arith.constant 0 : i32
    %c0_i32_0 = arith.constant 0 : i32
    %c0_i32_1 = arith.constant 0 : i32
    return %c0_i32, %c0_i32_0, %1 : i32, i32, i32
  }
  func.func @transform_4(%arg0: i32, %arg1: i32) -> (i32, i32) {
    %c1_i32 = arith.constant 1 : i32
    %0 = arith.muli %arg0, %c1_i32 : i32
    %1 = arith.addi %0, %arg1 : i32
    %c0_i32 = arith.constant 0 : i32
    %c0_i32_0 = arith.constant 0 : i32
    return %c0_i32, %1 : i32, i32
  }
  func.func @transform_5(%arg0: i32, %arg1: i32) -> (i32, i32, i32) {
    %c0_i32 = arith.constant 0 : i32
    %c0_i32_0 = arith.constant 0 : i32
    %c0_i32_1 = arith.constant 0 : i32
    return %arg0, %c0_i32, %c0_i32_0 : i32, i32, i32
  }
}

</mosaic_0001>

<llo_original>
// kernel: centernet_loss_forward.1
$region0: #{centernet_loss_forward.1}
  #allocation0 [shape = 'u32[]', space=smem, size = 0x4, offset = 0x4, fixed_abs, tag = 'smem constant byte address 0x4 - core index']
  #allocation1 [shape = 'u32[144,128]{1,0:T(1,128)}', space=vmem, size = 0x12000, scoped, tag = 'internal scratch']
  #allocation2 [shape = 'f32[2,4,256]{2,1,0:T(4,128)}', space=vmem, size = 0x2000, scoped, tag = 'scratch operand']
  #allocation3 [shape = 'f32[2,4,256]{2,1,0:T(4,128)}', space=vmem, size = 0x2000, scoped, tag = 'scratch operand']
  #allocation4 [shape = 'f32[2,2,256]{2,1,0:T(2,128)}', space=vmem, size = 0x1000, scoped, tag = 'scratch operand']
  #allocation5 [shape = 'f32[2,2,256]{2,1,0:T(2,128)}', space=vmem, size = 0x1000, scoped, tag = 'scratch operand']
  #allocation6 [shape = 'f32[2,256]{1,0:T(2,128)}', space=vmem, size = 0x800, scoped, tag = 'scratch operand']
  %s0 = inlined_call_operand.vmem [shape: f32[2,8,256], index: 0, kind: input, shape index: {}]
  %s1 = inlined_call_operand.vmem [shape: f32[2,4,256], index: 1, kind: input, shape index: {}]
  %s2 = inlined_call_operand.vmem [shape: f32[2,2,256], index: 2, kind: input, shape index: {}]
  %s3 = inlined_call_operand.vmem [shape: f32[2,2,256], index: 3, kind: input, shape index: {}]
  %s4 = inlined_call_operand.vmem [shape: f32[2,256], index: 4, kind: input, shape index: {}]
  %s5 = inlined_call_operand.vmem [shape: f32[1,8,128], index: 5, kind: output, shape index: {}]
  %s6 = sld [smem:[#allocation0]]
  $region38: #{centernet_loss_forward.1} parent=0
    _
  %s8 = ssub.s32 1, %s6
  %s9 = scalar_select 0, %s8, %s6
  // Predicated region
  $region2: #{centernet_loss_forward.1} parent=0 // pred_check
    _
  $region3: #{centernet_loss_forward.1} parent=0 // pred_check_branch
    %11 = sbr.rel (0) target = $region5
  $region4: #{centernet_loss_forward.1} parent=0 // pred_region
    %s12 = sadd.s32 0, 0
    %s13 = smul.u32 2, %s12
    %p14 = scmp.lt.s32.totalorder %s13, 1
    %s15 = scalar_select %p14, %s13, 1
    %s16 = smul.addr %s15, 8
    %s17 = scalar_lea.vmem %s0, %s16
    %s18 = sadd.s32 0, 0
    %s19 = smul.u32 2, %s18
  $region5: #{centernet_loss_forward.1} parent=0 // pred_fallthru
    _
  // Predicated region
  $region6: #{centernet_loss_forward.1} parent=0 // pred_check
    _
  $region7: #{centernet_loss_forward.1} parent=0 // pred_check_branch
    %21 = sbr.rel (0) target = $region9
  $region8: #{centernet_loss_forward.1} parent=0 // pred_region
    %s22 = sadd.s32 0, 0
    %s23 = smul.u32 2, %s22
    %p24 = scmp.lt.s32.totalorder %s23, 1
    %s25 = scalar_select %p24, %s23, 1
    %s26 = smul.addr %s25, 4
    %s27 = scalar_lea.vmem %s1, %s26
    %s28 = sadd.s32 0, 0
    %s29 = smul.u32 2, %s28
  $region9: #{centernet_loss_forward.1} parent=0 // pred_fallthru
    _
  // Predicated region
  $region10: #{centernet_loss_forward.1} parent=0 // pred_check
    _
  $region11: #{centernet_loss_forward.1} parent=0 // pred_check_branch
    %31 = sbr.rel (0) target = $region13
  $region12: #{centernet_loss_forward.1} parent=0 // pred_region
    %s32 = sadd.s32 0, 0
    %s33 = smul.u32 2, %s32
    %p34 = scmp.lt.s32.totalorder %s33, 1
    %s35 = scalar_select %p34, %s33, 1
    %s36 = smul.addr %s35, 2
    %s37 = scalar_lea.vmem %s2, %s36
    %s38 = sadd.s32 0, 0
    %s39 = smul.u32 2, %s38
  $region13: #{centernet_loss_forward.1} parent=0 // pred_fallthru
    _
  // Predicated region
  $region14: #{centernet_loss_forward.1} parent=0 // pred_check
    _
  $region15: #{centernet_loss_forward.1} parent=0 // pred_check_branch
    %41 = sbr.rel (0) target = $region17
  $region16: #{centernet_loss_forward.1} parent=0 // pred_region
    %s42 = sadd.s32 0, 0
    %s43 = smul.u32 2, %s42
    %p44 = scmp.lt.s32.totalorder %s43, 1
    %s45 = scalar_select %p44, %s43, 1
    %s46 = smul.addr %s45, 2
    %s47 = scalar_lea.vmem %s3, %s46
    %s48 = sadd.s32 0, 0
    %s49 = smul.u32 2, %s48
  $region17: #{centernet_loss_forward.1} parent=0 // pred_fallthru
    _
  // Predicated region
  $region18: #{centernet_loss_forward.1} parent=0 // pred_check
    _
  $region19: #{centernet_loss_forward.1} parent=0 // pred_check_branch
    %51 = sbr.rel (0) target = $region21
  $region20: #{centernet_loss_forward.1} parent=0 // pred_region
    %s52 = sadd.s32 0, 0
    %s53 = smul.u32 2, %s52
    %p54 = scmp.lt.s32.totalorder %s53, 1
    %s55 = scalar_select %p54, %s53, 1
    %s56 = smul.addr %s55, 2
    %s57 = scalar_lea.vmem %s4, %s56
    %s58 = sadd.s32 0, 0
    %s59 = smul.u32 2, %s58
  $region21: #{centernet_loss_forward.1} parent=0 // pred_fallthru
    _
  %s60 = sadd.s32 0, 0
  %s61 = smul.u32 2, %s60
  %p62 = scmp.lt.s32.totalorder %s61, 1
  %s63 = scalar_select %p62, %s61, 1
  %s64 = smul.addr %s63, 8
  %s65 = scalar_lea.vmem %s0, %s64
  %s66 = sadd.s32 0, 0
  %s67 = smul.u32 2, %s66
  %p68 = scmp.lt.s32.totalorder %s67, 1
  %s69 = scalar_select %p68, %s67, 1
  %s70 = smul.addr %s69, 4
  %s71 = scalar_lea.vmem %s1, %s70
  %s72 = sadd.s32 0, 0
  %s73 = smul.u32 2, %s72
  %p74 = scmp.lt.s32.totalorder %s73, 1
  %s75 = scalar_select %p74, %s73, 1
  %s76 = smul.addr %s75, 2
  %s77 = scalar_lea.vmem %s2, %s76
  %s78 = sadd.s32 0, 0
  %s79 = smul.u32 2, %s78
  %p80 = scmp.lt.s32.totalorder %s79, 1
  %s81 = scalar_select %p80, %s79, 1
  %s82 = smul.addr %s81, 2
  %s83 = scalar_lea.vmem %s3, %s82
  %s84 = sadd.s32 0, 0
  %s85 = smul.u32 2, %s84
  %p86 = scmp.lt.s32.totalorder %s85, 1
  %s87 = scalar_select %p86, %s85, 1
  %s88 = smul.addr %s87, 2
  %s89 = scalar_lea.vmem %s4, %s88
  %s90 = sadd.s32 0, 0
  %s91 = smul.u32 2, %s90
  %p92 = scmp.lt.s32.totalorder %s91, 1
  %s93 = scalar_select %p92, %s91, 1
  %s94 = smul.addr %s93, 8
  %s95 = scalar_lea.vmem %s0, %s94
  %s96 = sadd.s32 0, 0
  %s97 = smul.u32 2, %s96
  %s98 = sadd.s32 0, 0
  %s99 = smul.u32 2, %s98
  %p100 = scmp.lt.s32.totalorder %s99, 1
  %s101 = scalar_select %p100, %s99, 1
  %s102 = smul.addr %s101, 4
  %s103 = scalar_lea.vmem %s1, %s102
  %s104 = sadd.s32 0, 0
  %s105 = smul.u32 2, %s104
  %s106 = sadd.s32 0, 0
  %s107 = smul.u32 2, %s106
  %p108 = scmp.lt.s32.totalorder %s107, 1
  %s109 = scalar_select %p108, %s107, 1
  %s110 = smul.addr %s109, 2
  %s111 = scalar_lea.vmem %s2, %s110
  %s112 = sadd.s32 0, 0
  %s113 = smul.u32 2, %s112
  %s114 = sadd.s32 0, 0
  %s115 = smul.u32 2, %s114
  %p116 = scmp.lt.s32.totalorder %s115, 1
  %s117 = scalar_select %p116, %s115, 1
  %s118 = smul.addr %s117, 2
  %s119 = scalar_lea.vmem %s3, %s118
  %s120 = sadd.s32 0, 0
  %s121 = smul.u32 2, %s120
  %s122 = sadd.s32 0, 0
  %s123 = smul.u32 2, %s122
  %p124 = scmp.lt.s32.totalorder %s123, 1
  %s125 = scalar_select %p124, %s123, 1
  %s126 = smul.addr %s125, 2
  %s127 = scalar_lea.vmem %s4, %s126
  %s128 = sadd.s32 0, 0
  %s129 = smul.u32 2, %s128
  %p130 = scmp.eq.s32.totalorder 0, 0
  // Predicated region
  $region22: #{centernet_loss_forward.1} parent=0 // pred_check
    %p131 = pneg %p130
  $region23: #{centernet_loss_forward.1} parent=0 // pred_check_branch
    %133 = sbr.rel (%p131) target = $region25
  $region24: #{centernet_loss_forward.1} parent=0 // pred_region
    %134 = vst [vmem:[#allocation2] sm:$0xff] 0.0
    %135 = vst [vmem:[#allocation2 + $0x8] sm:$0xff] 0.0
    %136 = vst [vmem:[#allocation3] sm:$0xff] 0.0
    %137 = vst [vmem:[#allocation3 + $0x8] sm:$0xff] 0.0
    %138 = vst [vmem:[#allocation4] sm:$0xf] 0.0
    %139 = vst [vmem:[#allocation4 + $0x4] sm:$0xf] 0.0
    %140 = vst [vmem:[#allocation5] sm:$0xf] 0.0
    %141 = vst [vmem:[#allocation5 + $0x4] sm:$0xf] 0.0
    %142 = vst [vmem:[#allocation6] sm:$0xf] 0.0
  $region25: #{centernet_loss_forward.1} parent=0 // pred_fallthru
    _
  %v143 = vld [vmem:[%s95] sm:$0xf]
  %v144 = vld [vmem:[%s95 + $0x8] sm:$0xf]
  %v145 = vld [vmem:[%s95 + $0x10] sm:$0xf]
  %v146 = vld [vmem:[%s95 + $0x18] sm:$0xf]
  %v147 = vld [vmem:[%s103] sm:$0xff]
  %v148 = vld [vmem:[%s103 + $0x8] sm:$0xff]
  %v149 = vxor.u32 %v143, 2147483648
  %v150 = vxor.u32 %v144, 2147483648
  %v151 = vxor.u32 %v145, 2147483648
  %v152 = vxor.u32 %v146, 2147483648
  %v153 = vmul.f32 %v149, 1.442695
  %v154 = vpow.pop %v153
  %v155 = vmul.f32 %v150, 1.442695
  %v156 = vpow.pop %v155
  %v157 = vmul.f32 %v151, 1.442695
  %v158 = vpow.pop %v157
  %v159 = vmul.f32 %v152, 1.442695
  %v160 = vpow.pop %v159
  %v161 = vadd.f32 %v154, 1.0
  %v162 = vadd.f32 %v156, 1.0
  %v163 = vadd.f32 %v158, 1.0
  %v164 = vadd.f32 %v160, 1.0
  %v165 = vrcp.pop %v161
  %v166 = vmul.f32 1.0, %v165
  %v167 = vrcp.pop %v162
  %v168 = vmul.f32 1.0, %v167
  %v169 = vrcp.pop %v163
  %v170 = vmul.f32 1.0, %v169
  %v171 = vrcp.pop %v164
  %v172 = vmul.f32 1.0, %v171
  %v173 = vmax.f32 %v166, 0.0001
  %v174 = vmax.f32 %v168, 0.0001
  %v175 = vmax.f32 %v170, 0.0001
  %v176 = vmax.f32 %v172, 0.0001
  %v177 = vmin.f32 %v173, 0.9999
  %v178 = vmin.f32 %v174, 0.9999
  %v179 = vmin.f32 %v175, 0.9999
  %v180 = vmin.f32 %v176, 0.9999
  %vm181 = vcmp.ge.f32.partialorder %v147, 1.0
  %vm182 = vcmp.ge.f32.partialorder %v148, 1.0
  %v183 = vsel %vm181, 1, 0
  %v184 = vsel %vm182, 1, 0
  %v185 = vcvt.s32.f32 %v183
  %v186 = vcvt.s32.f32 %v184
  %v187 = vsub.f32 1.0, %v185
  %v188 = vsub.f32 1.0, %v186
  %v189 = vsub.f32 1.0, %v147
  %v190 = vsub.f32 1.0, %v148
  %v191 = vmul.f32 %v189, %v189
  %v192 = vmul.f32 %v190, %v190
  %v193 = vmul.f32 %v191, %v191
  %v194 = vmul.f32 %v192, %v192
  %v195 = vlog2.pop %v177
  %v196 = vmul.f32 %v195, 0.6931472
  %v197 = vlog2.pop %v178
  %v198 = vmul.f32 %v197, 0.6931472
  %v199 = vlog2.pop %v179
  %v200 = vmul.f32 %v199, 0.6931472
  %v201 = vlog2.pop %v180
  %v202 = vmul.f32 %v201, 0.6931472
  %v203 = vsub.f32 0.0, %v196
  %v204 = vsub.f32 0.0, %v198
  %v205 = vsub.f32 0.0, %v200
  %v206 = vsub.f32 0.0, %v202
  %v207 = vsub.f32 1.0, %v177
  %v208 = vsub.f32 1.0, %v178
  %v209 = vsub.f32 1.0, %v179
  %v210 = vsub.f32 1.0, %v180
  %v211 = vmul.f32 %v207, %v207
  %v212 = vmul.f32 %v208, %v208
  %v213 = vmul.f32 %v209, %v209
  %v214 = vmul.f32 %v210, %v210
  %v215 = vmul.f32 %v203, %v211
  %v216 = vmul.f32 %v204, %v212
  %v217 = vmul.f32 %v205, %v213
  %v218 = vmul.f32 %v206, %v214
  %v221 = vcombine.high %v185, %v185
  %v222 = vcombine.high %v186, %v186
  %v225 = vmul.f32 %v215, %v185
  %v226 = vmul.f32 %v216, %v221
  %v227 = vmul.f32 %v217, %v186
  %v228 = vmul.f32 %v218, %v222
  %v229 = vlog2.pop %v207
  %v230 = vmul.f32 %v229, 0.6931472
  %v231 = vlog2.pop %v208
  %v232 = vmul.f32 %v231, 0.6931472
  %v233 = vlog2.pop %v209
  %v234 = vmul.f32 %v233, 0.6931472
  %v235 = vlog2.pop %v210
  %v236 = vmul.f32 %v235, 0.6931472
  %v237 = vsub.f32 0.0, %v230
  %v238 = vsub.f32 0.0, %v232
  %v239 = vsub.f32 0.0, %v234
  %v240 = vsub.f32 0.0, %v236
  %v241 = vmul.f32 %v177, %v177
  %v242 = vmul.f32 %v178, %v178
  %v243 = vmul.f32 %v179, %v179
  %v244 = vmul.f32 %v180, %v180
  %v245 = vmul.f32 %v237, %v241
  %v246 = vmul.f32 %v238, %v242
  %v247 = vmul.f32 %v239, %v243
  %v248 = vmul.f32 %v240, %v244
  %v251 = vcombine.high %v193, %v193
  %v252 = vcombine.high %v194, %v194
  %v255 = vmul.f32 %v245, %v193
  %v256 = vmul.f32 %v246, %v251
  %v257 = vmul.f32 %v247, %v194
  %v258 = vmul.f32 %v248, %v252
  %v261 = vcombine.high %v187, %v187
  %v262 = vcombine.high %v188, %v188
  %v265 = vmul.f32 %v255, %v187
  %v266 = vmul.f32 %v256, %v261
  %v267 = vmul.f32 %v257, %v188
  %v268 = vmul.f32 %v258, %v262
  %v269 = vld [vmem:[#allocation2] sm:$0xff]
  %v270 = vld [vmem:[#allocation2 + $0x8] sm:$0xff]
  %v271 = vadd.f32 %v225, %v265
  %v272 = vadd.f32 %v226, %v266
  %v273 = vadd.f32 %v227, %v267
  %v274 = vadd.f32 %v228, %v268
  %v279 = vcombine.low %v271, %v272
  %v280 = vcombine.low %v273, %v274
  %v283 = vadd.f32 %v269, %v279
  %v284 = vadd.f32 %v270, %v280
  %285 = vst [vmem:[#allocation2] sm:$0xff] %v283
  %286 = vst [vmem:[#allocation2 + $0x8] sm:$0xff] %v284
  %v287 = vld [vmem:[#allocation3] sm:$0xff]
  %v288 = vld [vmem:[#allocation3 + $0x8] sm:$0xff]
  %v289 = vadd.f32 %v287, %v185
  %v290 = vadd.f32 %v288, %v186
  %291 = vst [vmem:[#allocation3] sm:$0xff] %v289
  %292 = vst [vmem:[#allocation3 + $0x8] sm:$0xff] %v290
  %v293 = vld [vmem:[%s127] sm:$0xf]
  %v296 = vunpack.c.l.s4 1966171168
  %v297 = vunpack.c.0.s8 %v296
  %v298 = vlaneseq
  %v299 = vshrl.u32 %v298, 7
  %v300 = vsub.s32 %v297, %v299
  %v301 = vrot.slane %v293, %v300
  %v302 = vcombine.high %v301, %v301
  %v303 = vld [vmem:[%s95] sm:$0x30]
  %v304 = vld [vmem:[%s95 + $0x8] sm:$0x30]
  %v305 = vld [vmem:[%s95 + $0x10] sm:$0x30]
  %v306 = vld [vmem:[%s95 + $0x18] sm:$0x30]
  %v307 = vld [vmem:[%s95] sm:$0xc0]
  %v308 = vld [vmem:[%s95 + $0x8] sm:$0xc0]
  %v309 = vld [vmem:[%s95 + $0x10] sm:$0xc0]
  %v310 = vld [vmem:[%s95 + $0x18] sm:$0xc0]
  %v311 = vld [vmem:[#allocation4] sm:$0xf]
  %v312 = vld [vmem:[#allocation4 + $0x4] sm:$0xf]
  %v313 = vld [vmem:[%s111] sm:$0xf]
  %v314 = vld [vmem:[%s111 + $0x4] sm:$0xf]
  %v318 = vunpack.c.l.s4 1983009808
  %v319 = vunpack.c.0.s8 %v318
  %v320 = vlaneseq
  %v321 = vshrl.u32 %v320, 7
  %v322 = vsub.s32 %v319, %v321
  %v323 = vrot.slane %v313, %v322
  %v324 = vcombine.low %v323, %v323
  %v326 = vunpack.c.l.s4 1983009808
  %v327 = vunpack.c.0.s8 %v326
  %v328 = vlaneseq
  %v329 = vshrl.u32 %v328, 7
  %v330 = vsub.s32 %v327, %v329
  %v331 = vrot.slane %v314, %v330
  %v332 = vcombine.low %v331, %v331
  %v337 = vsub.f32 %v303, %v324
  %v338 = vsub.f32 %v304, %v323
  %v339 = vsub.f32 %v305, %v332
  %v340 = vsub.f32 %v306, %v331
  %v341 = vand.u32 2147483647, %v337
  %v342 = vand.u32 2147483647, %v338
  %v343 = vand.u32 2147483647, %v339
  %v344 = vand.u32 2147483647, %v340
  %v345 = vlaneseq
  %v346 = vshrl.u32 %v345, 7
  %v347 = vsub.s32 0, %v346
  %v348 = vrot.slane %v301, %v347
  %v349 = vlaneseq
  %v350 = vshrl.u32 %v349, 7
  %v351 = vsub.s32 1, %v350
  %v352 = vrot.slane %v301, %v351
  %v353 = vlaneseq
  %v354 = vshrl.u32 %v353, 7
  %v355 = vsub.s32 0, %v354
  %v356 = vrot.slane %v302, %v355
  %v357 = vlaneseq
  %v358 = vshrl.u32 %v357, 7
  %v359 = vsub.s32 1, %v358
  %v360 = vrot.slane %v302, %v359
  %v365 = vmul.f32 %v341, %v348
  %v366 = vmul.f32 %v342, %v352
  %v367 = vmul.f32 %v343, %v356
  %v368 = vmul.f32 %v344, %v360
  %v373 = vcombine.high %v365, %v366
  %v375 = vunpack.c.l.s4 1983009808
  %v376 = vunpack.c.0.s8 %v375
  %v377 = vlaneseq
  %v378 = vshrl.u32 %v377, 7
  %v379 = vsub.s32 %v376, %v378
  %v380 = vrot.slane %v373, %v379
  %v381 = vcombine.high %v367, %v368
  %v383 = vunpack.c.l.s4 1983009808
  %v384 = vunpack.c.0.s8 %v383
  %v385 = vlaneseq
  %v386 = vshrl.u32 %v385, 7
  %v387 = vsub.s32 %v384, %v386
  %v388 = vrot.slane %v381, %v387
  %v391 = vadd.f32 %v311, %v380
  %v392 = vadd.f32 %v312, %v388
  %393 = vst [vmem:[#allocation4] sm:$0xf] %v391
  %394 = vst [vmem:[#allocation4 + $0x4] sm:$0xf] %v392
  %v395 = vld [vmem:[#allocation5] sm:$0xf]
  %v396 = vld [vmem:[#allocation5 + $0x4] sm:$0xf]
  %v397 = vld [vmem:[%s119] sm:$0xf]
  %v398 = vld [vmem:[%s119 + $0x4] sm:$0xf]
  %v401 = vcombine.low %v397, %v397
  %v403 = vunpack.c.l.s4 1983009808
  %v404 = vunpack.c.0.s8 %v403
  %v405 = vlaneseq
  %v406 = vshrl.u32 %v405, 7
  %v407 = vsub.s32 %v404, %v406
  %v408 = vrot.slane %v401, %v407
  %v409 = vcombine.low %v408, %v408
  %v410 = vcombine.low %v398, %v398
  %v412 = vunpack.c.l.s4 1983009808
  %v413 = vunpack.c.0.s8 %v412
  %v414 = vlaneseq
  %v415 = vshrl.u32 %v414, 7
  %v416 = vsub.s32 %v413, %v415
  %v417 = vrot.slane %v410, %v416
  %v418 = vcombine.low %v417, %v417
  %v423 = vsub.f32 %v307, %v409
  %v424 = vsub.f32 %v308, %v408
  %v425 = vsub.f32 %v309, %v418
  %v426 = vsub.f32 %v310, %v417
  %v427 = vand.u32 2147483647, %v423
  %v428 = vand.u32 2147483647, %v424
  %v429 = vand.u32 2147483647, %v425
  %v430 = vand.u32 2147483647, %v426
  %v431 = vmul.f32 %v427, %v348
  %v432 = vmul.f32 %v428, %v352
  %v433 = vmul.f32 %v429, %v356
  %v434 = vmul.f32 %v430, %v360
  %v439 = vcombine.high %v431, %v432
  %v441 = vunpack.c.l.s4 1983009808
  %v442 = vunpack.c.0.s8 %v441
  %v443 = vlaneseq
  %v444 = vshrl.u32 %v443, 7
  %v445 = vsub.s32 %v442, %v444
  %v446 = vrot.slane %v439, %v445
  %v447 = vcombine.high %v446, %v446
  %v448 = vcombine.high %v433, %v434
  %v450 = vunpack.c.l.s4 1983009808
  %v451 = vunpack.c.0.s8 %v450
  %v452 = vlaneseq
  %v453 = vshrl.u32 %v452, 7
  %v454 = vsub.s32 %v451, %v453
  %v455 = vrot.slane %v448, %v454
  %v456 = vcombine.high %v455, %v455
  %v459 = vadd.f32 %v395, %v447
  %v460 = vadd.f32 %v396, %v456
  %461 = vst [vmem:[#allocation5] sm:$0xf] %v459
  %462 = vst [vmem:[#allocation5 + $0x4] sm:$0xf] %v460
  %v463 = vld [vmem:[#allocation6] sm:$0xf]
  %v464 = vadd.f32 %v463, %v293
  %465 = vst [vmem:[#allocation6] sm:$0xf] %v464
  // Predicated region
  $region26: #{centernet_loss_forward.1} parent=0 // pred_check
    %p466 = pneg %p130
  $region27: #{centernet_loss_forward.1} parent=0 // pred_check_branch
    %468 = sbr.rel (%p466) target = $region29
  $region28: #{centernet_loss_forward.1} parent=0 // pred_region
    %v469 = vld [vmem:[#allocation2] sm:$0xff]
    %v470 = vld [vmem:[#allocation2 + $0x8] sm:$0xff]
    %v473 = vcombine.high %v469, %v469
    %v474 = vcombine.high %v470, %v470
    %vm477 = vcmask 1043456
    %v478 = vsel %vm477, %v469, 0.0
    %v479 = vsel %vm477, %v473, 0.0
    %v480 = vadd.f32 %v478, %v479
    %v481 = vsel %vm477, %v470, 0.0
    %v482 = vadd.f32 %v480, %v481
    %v483 = vsel %vm477, %v474, 0.0
    %v484 = vadd.f32 %v482, %v483
    %485 = vadd.xlane.f32.xlu0 %v484
    %v486 = vpop.xlane.xlu0 %485
    %v487 = vrot.slane %v486, 4
    %v488 = vadd.f32 %v486, %v487
    %v489 = vrot.slane %v488, 2
    %v490 = vadd.f32 %v488, %v489
    %v491 = vrot.slane %v490, 1
    %v492 = vadd.f32 %v490, %v491
    %s493 = vtos %v492
    %v494 = vld [vmem:[#allocation3] sm:$0xff]
    %v495 = vld [vmem:[#allocation3 + $0x8] sm:$0xff]
    %v498 = vcombine.high %v494, %v494
    %v499 = vcombine.high %v495, %v495
    %v502 = vsel %vm477, %v494, 0.0
    %v503 = vsel %vm477, %v498, 0.0
    %v504 = vadd.f32 %v502, %v503
    %v505 = vsel %vm477, %v495, 0.0
    %v506 = vadd.f32 %v504, %v505
    %v507 = vsel %vm477, %v499, 0.0
    %v508 = vadd.f32 %v506, %v507
    %509 = vadd.xlane.f32.xlu0 %v508
    %v510 = vpop.xlane.xlu0 %509
    %v511 = vrot.slane %v510, 4
    %v512 = vadd.f32 %v510, %v511
    %v513 = vrot.slane %v512, 2
    %v514 = vadd.f32 %v512, %v513
    %v515 = vrot.slane %v514, 1
    %v516 = vadd.f32 %v514, %v515
    %s517 = vtos %v516
    %v518 = vld [vmem:[#allocation4] sm:$0xf]
    %v519 = vld [vmem:[#allocation4 + $0x4] sm:$0xf]
    %v523 = vunpack.c.l.s4 1983009808
    %v524 = vunpack.c.0.s8 %v523
    %v525 = vlaneseq
    %v526 = vshrl.u32 %v525, 7
    %v527 = vsub.s32 %v524, %v526
    %v528 = vrot.slane %v518, %v527
    %v529 = vcombine.high %v528, %v528
    %v531 = vunpack.c.l.s4 1983009808
    %v532 = vunpack.c.0.s8 %v531
    %v533 = vlaneseq
    %v534 = vshrl.u32 %v533, 7
    %v535 = vsub.s32 %v532, %v534
    %v536 = vrot.slane %v519, %v535
    %v537 = vcombine.high %v536, %v536
    %vm542 = vcmask 1041408
    %v543 = vsel %vm542, %v528, 0.0
    %v544 = vsel %vm542, %v529, 0.0
    %v545 = vadd.f32 %v543, %v544
    %v546 = vsel %vm542, %v536, 0.0
    %v547 = vadd.f32 %v545, %v546
    %v548 = vsel %vm542, %v537, 0.0
    %v549 = vadd.f32 %v547, %v548
    %550 = vadd.xlane.f32.xlu0 %v549
    %v551 = vpop.xlane.xlu0 %550
    %v552 = vrot.slane %v551, 4
    %v553 = vadd.f32 %v551, %v552
    %v554 = vrot.slane %v553, 2
    %v555 = vadd.f32 %v553, %v554
    %v556 = vrot.slane %v555, 1
    %v557 = vadd.f32 %v555, %v556
    %s558 = vtos %v557
    %v559 = vld [vmem:[#allocation5] sm:$0xf]
    %v560 = vld [vmem:[#allocation5 + $0x4] sm:$0xf]
    %v564 = vunpack.c.l.s4 1983009808
    %v565 = vunpack.c.0.s8 %v564
    %v566 = vlaneseq
    %v567 = vshrl.u32 %v566, 7
    %v568 = vsub.s32 %v565, %v567
    %v569 = vrot.slane %v559, %v568
    %v570 = vcombine.high %v569, %v569
    %v572 = vunpack.c.l.s4 1983009808
    %v573 = vunpack.c.0.s8 %v572
    %v574 = vlaneseq
    %v575 = vshrl.u32 %v574, 7
    %v576 = vsub.s32 %v573, %v575
    %v577 = vrot.slane %v560, %v576
    %v578 = vcombine.high %v577, %v577
    %v583 = vsel %vm542, %v569, 0.0
    %v584 = vsel %vm542, %v570, 0.0
    %v585 = vadd.f32 %v583, %v584
    %v586 = vsel %vm542, %v577, 0.0
    %v587 = vadd.f32 %v585, %v586
    %v588 = vsel %vm542, %v578, 0.0
    %v589 = vadd.f32 %v587, %v588
    %590 = vadd.xlane.f32.xlu0 %v589
    %v591 = vpop.xlane.xlu0 %590
    %v592 = vrot.slane %v591, 4
    %v593 = vadd.f32 %v591, %v592
    %v594 = vrot.slane %v593, 2
    %v595 = vadd.f32 %v593, %v594
    %v596 = vrot.slane %v595, 1
    %v597 = vadd.f32 %v595, %v596
    %s598 = vtos %v597
    %v599 = vld [vmem:[#allocation6] sm:$0xf]
    %v602 = vunpack.c.l.s4 1983009808
    %v603 = vunpack.c.0.s8 %v602
    %v604 = vlaneseq
    %v605 = vshrl.u32 %v604, 7
    %v606 = vsub.s32 %v603, %v605
    %v607 = vrot.slane %v599, %v606
    %v608 = vcombine.high %v607, %v607
    %v611 = vsel %vm542, %v607, 0.0
    %v612 = vsel %vm542, %v608, 0.0
    %v613 = vadd.f32 %v611, %v612
    %614 = vadd.xlane.f32.xlu0 %v613
    %v615 = vpop.xlane.xlu0 %614
    %v616 = vrot.slane %v615, 4
    %v617 = vadd.f32 %v615, %v616
    %v618 = vrot.slane %v617, 2
    %v619 = vadd.f32 %v617, %v618
    %v620 = vrot.slane %v619, 1
    %v621 = vadd.f32 %v619, %v620
    %s622 = vtos %v621
    %s623 = smul.f32 %s622, 2.0
    %v624 = vlaneseq
    %v625 = vand.u32 %v624, 127
    %vm626 = vcmp.eq.s32.totalorder %v625, 0
    %v627 = vsel %vm626, 1, 0
    %v628 = vcvt.s32.f32 %v627
    %v629 = vstv %s493
    %v630 = vmul.f32 %v628, %v629
    %vm631 = vcmp.eq.s32.totalorder %v625, 1
    %v632 = vsel %vm631, 1, 0
    %v633 = vcvt.s32.f32 %v632
    %v634 = vstv %s517
    %v635 = vmul.f32 %v633, %v634
    %v636 = vadd.f32 %v630, %v635
    %vm637 = vcmp.eq.s32.totalorder %v625, 2
    %v638 = vsel %vm637, 1, 0
    %v639 = vcvt.s32.f32 %v638
    %v640 = vstv %s558
    %v641 = vmul.f32 %v639, %v640
    %v642 = vadd.f32 %v636, %v641
    %vm643 = vcmp.eq.s32.totalorder %v625, 3
    %v644 = vsel %vm643, 1, 0
    %v645 = vcvt.s32.f32 %v644
    %v646 = vstv %s598
    %v647 = vmul.f32 %v645, %v646
    %v648 = vadd.f32 %v642, %v647
    %vm649 = vcmp.eq.s32.totalorder %v625, 4
    %v650 = vsel %vm649, 1, 0
    %v651 = vcvt.s32.f32 %v650
    %v652 = vstv %s623
    %v653 = vmul.f32 %v651, %v652
    %v654 = vadd.f32 %v648, %v653
    %655 = vst [vmem:[%s5] sm:$0xff] %v654
  $region29: #{centernet_loss_forward.1} parent=0 // pred_fallthru
    _
  // Predicated region
  $region30: #{centernet_loss_forward.1} parent=0 // pred_check
    _
  $region31: #{centernet_loss_forward.1} parent=0 // pred_check_branch
    %657 = sbr.rel (0) target = $region33
  $region32: #{centernet_loss_forward.1} parent=0 // pred_region
    _
  $region33: #{centernet_loss_forward.1} parent=0 // pred_fallthru
    _
  // Predicated region
  $region34: #{centernet_loss_forward.1} parent=0 // pred_check
    _
  $region35: #{centernet_loss_forward.1} parent=0 // pred_check_branch
    %659 = sbr.rel (0) target = $region37
  $region36: #{centernet_loss_forward.1} parent=0 // pred_region
    _
  $region37: #{centernet_loss_forward.1} parent=0 // pred_fallthru
    _

</llo_original>
